<compile_context>
chip_gen: v7x
topology: tpu7x:2x2x1
jax: 0.10.0
libtpu: 0.0.40
codegen_flags: <defaults>
</compile_context>

<pallas_src>
import jax
import jax.numpy as jnp
from jax.experimental import pallas as pl
from jax.experimental.pallas import tpu as pltpu

MiB = 1024 * 1024
LANE = 128
MAX_WIDTH = 4096


def _h_sigmoid_kernel(x_ref, o_ref):
    # relu6(x + 3) / 6 == clamp(x + 3, 0, 6) / 6, computed in f32 then cast.
    x = x_ref[...].astype(jnp.float32)
    o_ref[...] = (jnp.clip(x + 3.0, 0.0, 6.0) / 6.0).astype(o_ref.dtype)


def _h_sigmoid_jnp(x):
    xf = x.astype(jnp.float32)
    return (jnp.clip(xf + 3.0, 0.0, 6.0) / 6.0).astype(x.dtype)


def _round_up(v, m):
    return ((v + m - 1) // m) * m


def _vmem_capacity_bytes():
    try:
        info = pltpu.get_tpu_info()
        cap = getattr(info, "vmem_capacity_bytes", None)
        if cap:
            return int(cap)
    except Exception:
        pass
    return 64 * MiB  # conservative (v7x-sized) fallback


def h_sigmoid(x, *, min_pallas_bytes=1 * MiB, donate_input=False):
    """Elementwise hard-sigmoid: relu6(x + 3) / 6. Matches torch semantics."""
    if not jnp.issubdtype(x.dtype, jnp.floating):
        # torch: integer input -> relu6 stays integral, true division -> float.
        return jnp.clip(x.astype(jnp.float32) + 3.0, 0.0, 6.0) / 6.0

    orig_shape = x.shape
    dtype = x.dtype
    n = x.size
    itemsize = jnp.dtype(dtype).itemsize
    total_bytes = n * itemsize

    # Small-tensor bypass: pallas_call dispatch + DMA setup dominates tiny
    # activations; XLA's fused elementwise is strictly better there.
    if n == 0 or total_bytes < min_pallas_bytes:
        return _h_sigmoid_jnp(x)

    # Widest lane-dense last dim (multiple of 128, <= 4096) dividing n exactly
    # so the 2-D view is a layout-preserving (zero-copy) reshape.
    width = None
    for w in range(MAX_WIDTH, 0, -LANE):
        if n % w == 0:
            width = w
            break
    if width is None:
        # n not a multiple of 128: any pad/slice/concat stitch around the
        # kernel costs a full extra HBM pass on a bandwidth-bound op, while
        # XLA's fused elementwise already hits the read+write roofline.
        return _h_sigmoid_jnp(x)

    rows = n // width
    x2d = x.reshape(rows, width)

    # Packed-sublane multiple for this dtype: 8 f32, 16 bf16 (float-only path).
    sublane = max(8, 32 // itemsize)

    # Generation-aware block budget: big blocks amortize the ~0.35 us/step
    # grid overhead, but 4x block (double-buffered in+out) must fit VMEM.
    vmem_cap = _vmem_capacity_bytes()
    if vmem_cap >= 96 * MiB:          # v5e / v6e: 128 MiB physical VMEM
        target_block_bytes = 16 * MiB
        vmem_limit = 72 * MiB         # 4 x 16 MiB buffers + headroom
    else:                             # v7x: 64 MiB VMEM per TensorCore
        target_block_bytes = 8 * MiB
        vmem_limit = 40 * MiB         # 4 x 8 MiB buffers + headroom

    block_rows = (target_block_bytes // (width * itemsize)) // sublane * sublane
    block_rows = max(sublane, block_rows)
    if block_rows > rows:
        block_rows = rows             # full-extent block is always legal

    num_steps = pl.cdiv(rows, block_rows)
    # v7x has 2 TensorCores; give the "parallel" grid an even number of steps
    # so both cores stream.  Only do this when each step still carries plenty
    # of work (>= ~2 MiB), so 1-TC chips lose at most one ~0.35 us step.
    if num_steps % 2 == 1 and rows >= 2 * sublane and total_bytes >= 4 * MiB:
        block_rows = _round_up(pl.cdiv(rows, num_steps + 1), sublane)
        num_steps = pl.cdiv(rows, block_rows)

    kwargs = {}
    if donate_input:
        # No bandwidth change, but lets XLA reuse x's HBM when it is donated.
        kwargs["input_output_aliases"] = {0: 0}

    out2d = pl.pallas_call(
        _h_sigmoid_kernel,
        out_shape=jax.ShapeDtypeStruct((rows, width), dtype),
        grid_spec=pltpu.PrefetchScalarGridSpec(
            num_scalar_prefetch=0,
            grid=(num_steps,),
            in_specs=[pl.BlockSpec((block_rows, width), lambda i: (i, 0))],
            out_specs=pl.BlockSpec((block_rows, width), lambda i: (i, 0)),
        ),
        compiler_params=pltpu.CompilerParams(
            dimension_semantics=("parallel",),
            vmem_limit_bytes=vmem_limit,
        ),
        **kwargs,
    )(x2d)

    return out2d.reshape(orig_shape)


def h_sigmoid_ref(x):
    return jnp.clip(x + 3.0, 0.0, 6.0) / 6.0


if __name__ == "__main__":
    key = jax.random.PRNGKey(0)
    k0, k1 = jax.random.split(key)

    # Spec-consistent NCHW activation: batch=2, channels=4, spatial=16x16.
    x_small = jax.random.normal(k0, (2, 4, 16, 16), dtype=jnp.float32) * 4.0
    ref_small = h_sigmoid_ref(x_small)

    # 1) Default path: tiny tensor -> fused-XLA bypass.
    out_bypass = jax.block_until_ready(h_sigmoid(x_small))
    # 2) Force the Pallas kernel path on the same input.
    out_kernel = jax.block_until_ready(h_sigmoid(x_small, min_pallas_bytes=0))
    assert out_kernel.shape == x_small.shape and out_kernel.dtype == x_small.dtype
    assert jnp.max(jnp.abs(out_kernel - ref_small)) < 1e-6
    assert jnp.max(jnp.abs(out_bypass - ref_small)) < 1e-6

    # 3) 4 MiB f32 tensor: takes the default kernel path and the even-step
    #    grid (2 steps) so both v7x TensorCores would stream.
    x_big = jax.random.normal(k1, (8, 32, 64, 64), dtype=jnp.float32) * 4.0
    out_big = jax.block_until_ready(h_sigmoid(x_big))
    assert jnp.max(jnp.abs(out_big - h_sigmoid_ref(x_big))) < 1e-6

    # 4) Element count not divisible by 128 -> roofline-optimal jnp fallback.
    x_odd = jax.random.normal(k0, (3, 5, 7), dtype=jnp.float32) * 4.0
    out_odd = jax.block_until_ready(h_sigmoid(x_odd, min_pallas_bytes=0))
    assert jnp.max(jnp.abs(out_odd - h_sigmoid_ref(x_odd))) < 1e-6

    print("KERNEL_OK")
</pallas_src>

<mosaic_0001>
module attributes {stable_mosaic.version = 11 : i64} {
  func.func @_h_sigmoid_kernel(%arg0: i32, %arg1: memref<1x2048xf32, #tpu.memory_space<vmem>>, %arg2: memref<1x2048xf32, #tpu.memory_space<vmem>>) attributes {dimension_semantics = [#tpu.dimension_semantics<parallel>], iteration_bounds = array<i64: 1>, scalar_prefetch = 0 : i64, scratch_operands = 0 : i64, tpu.core_type = #tpu.core_type<tc>, window_params = [{transform_indices = @transform_0, window_bounds = array<i64: 1, 2048>}, {transform_indices = @transform_1, window_bounds = array<i64: 1, 2048>}]} {
    %c0 = arith.constant 0 : index
    %c0_0 = arith.constant 0 : index
    %0 = vector.load %arg1[%c0, %c0_0] : memref<1x2048xf32, #tpu.memory_space<vmem>>, vector<1x2048xf32>
    %cst = arith.constant 3.000000e+00 : f32
    %1 = vector.broadcast %cst : f32 to vector<1x2048xf32>
    %2 = arith.addf %0, %1 : vector<1x2048xf32>
    %cst_1 = arith.constant 0.000000e+00 : f32
    %cst_2 = arith.constant 6.000000e+00 : f32
    %3 = vector.broadcast %cst_1 : f32 to vector<1x2048xf32>
    %4 = arith.maximumf %3, %2 : vector<1x2048xf32>
    %5 = vector.broadcast %cst_2 : f32 to vector<1x2048xf32>
    %6 = arith.minimumf %5, %4 : vector<1x2048xf32>
    %cst_3 = arith.constant 6.000000e+00 : f32
    %7 = vector.broadcast %cst_3 : f32 to vector<1x2048xf32>
    %8 = arith.divf %6, %7 : vector<1x2048xf32>
    %c0_4 = arith.constant 0 : index
    %c0_5 = arith.constant 0 : index
    %9 = vector.load %arg2[%c0_4, %c0_5] : memref<1x2048xf32, #tpu.memory_space<vmem>>, vector<1x2048xf32>
    tpu.vector_store %arg2[%c0_4, %c0_5], %8 {strides = array<i32>} : memref<1x2048xf32, #tpu.memory_space<vmem>>, vector<1x2048xf32>,
    return
  }
  func.func @transform_0(%arg0: i32) -> (i32, i32) {
    %c0_i32 = arith.constant 0 : i32
    %c0_i32_0 = arith.constant 0 : i32
    return %arg0, %c0_i32 : i32, i32
  }
  func.func @transform_1(%arg0: i32) -> (i32, i32) {
    %c0_i32 = arith.constant 0 : i32
    %c0_i32_0 = arith.constant 0 : i32
    return %arg0, %c0_i32 : i32, i32
  }
}

</mosaic_0001>

<llo_original>
// kernel: tpu_custom_call.1
$region0: #{tpu_custom_call.1}
  #allocation0 [shape = 'u32[]', space=smem, size = 0x4, offset = 0x4, fixed_abs, tag = 'smem constant byte address 0x4 - core index']
  #allocation1 [shape = 'u32[144,128]{1,0:T(1,128)}', space=vmem, size = 0x12000, scoped, tag = 'internal scratch']
  %s0 = inlined_call_operand.hbm [shape: f32[1,2048], index: 0, kind: input, shape index: {}]
  %s1 = inlined_call_operand.hbm [shape: f32[1,2048], index: 1, kind: output, shape index: {}]
  %s2 = sld [smem:[#allocation0]]
  $region18: #{tpu_custom_call.1} parent=0
    _
  %s4 = ssub.s32 1, %s2
  %s5 = scalar_select 0, %s4, %s2
  $region1: #{tpu_custom_call.1} parent=0
    #allocation2 [shape = 'u8[8192]{0}', space=vmem, size = 0x2000, scoped, tag = 'input window, operand 0, single buffered']
    #allocation3 [shape = 's32[1]{0}', space=sflag, size = 0x4, scoped, tag = 'scoped memory for tpu_custom_call.1']
    #allocation4 [shape = 's32[1]{0}', space=sflag, size = 0x4, scoped, tag = 'scoped memory for tpu_custom_call.1']
    #allocation5 [shape = 'u8[8192]{0}', space=vmem, size = 0x2000, scoped, tag = 'output window, operand 0, single buffered']
    %6 = vsyncpa [#allocation3], 0
    %7 = vsyncpa [#allocation4], 0
    // Predicated region
    $region2: #{tpu_custom_call.1} parent=1 // pred_check
      _
    $region3: #{tpu_custom_call.1} parent=1 // pred_check_branch
      %9 = sbr.rel (0) target = $region5
    $region4: #{tpu_custom_call.1} parent=1 // pred_region
      %s11 = ssub.s32 256, 256
      %12 = vsyncadd [#allocation3], %s11
      %s14 = sshll.u32 [#allocation2], 4
      %s15 = int_to_ptr.vmem [resolvable:$true] %s14
      %17 = dma.hbm_to_vmem [thread:$0]  %s0, 256, %s15, [#allocation3]
    $region5: #{tpu_custom_call.1} parent=1 // pred_fallthru
      _
    // Predicated region
    $region6: #{tpu_custom_call.1} parent=1 // pred_check
      _
    $region7: #{tpu_custom_call.1} parent=1 // pred_check_branch
      %19 = sbr.rel (0) target = $region9
    $region8: #{tpu_custom_call.1} parent=1 // pred_region
      %20 = dma.done [#allocation3], 256
    $region9: #{tpu_custom_call.1} parent=1 // pred_fallthru
      _
    %v21 = vld [vmem:[#allocation2] sm:$0xff]
    %v22 = vld [vmem:[#allocation2 + $0x8] sm:$0xff]
    %v23 = vadd.f32 %v21, 3.0
    %v24 = vadd.f32 %v22, 3.0
    %v25 = vmax.f32 %v23, 0.0
    %v26 = vmax.f32 %v24, 0.0
    %v27 = vmin.f32 %v25, 6.0
    %v28 = vmin.f32 %v26, 6.0
    %v29 = vrcp.pop 6.0
    %v30 = vmul.f32 %v27, %v29
    %v31 = vmul.f32 %v28, %v29
    %32 = vst [vmem:[#allocation5] sm:$0xff] %v30
    %33 = vst [vmem:[#allocation5 + $0x8] sm:$0xff] %v31
    // Predicated region
    $region10: #{tpu_custom_call.1} parent=1 // pred_check
      _
    $region11: #{tpu_custom_call.1} parent=1 // pred_check_branch
      %35 = sbr.rel (0) target = $region13
    $region12: #{tpu_custom_call.1} parent=1 // pred_region
      %s37 = ssub.s32 256, 256
      %38 = vsyncadd [#allocation4], %s37
      %s40 = sshll.u32 [#allocation5], 4
      %s41 = int_to_ptr.vmem [resolvable:$true] %s40
      %43 = dma.vmem_to_hbm [thread:$0]  %s41, 256, %s1, [#allocation4]
    $region13: #{tpu_custom_call.1} parent=1 // pred_fallthru
      _
    // Predicated region
    $region14: #{tpu_custom_call.1} parent=1 // pred_check
      _
    $region15: #{tpu_custom_call.1} parent=1 // pred_check_branch
      %45 = sbr.rel (0) target = $region17
    $region16: #{tpu_custom_call.1} parent=1 // pred_region
      %46 = dma.done [#allocation4], 256
    $region17: #{tpu_custom_call.1} parent=1 // pred_fallthru
      _
    %47 = vsyncpa [#allocation3], 1
    %48 = vsyncpa [#allocation4], 1

</llo_original>
